<compile_context>
chip_gen: v6e
topology: v6e:2x2x1
jax: 0.10.0
libtpu: 0.0.40
codegen_flags: <defaults>
</compile_context>

<pallas_src>
import functools

import jax
import jax.numpy as jnp
from jax.experimental import pallas as pl
from jax.experimental.pallas import tpu as pltpu

FEATURES = (32, 32, 32)   # features list of the PyTorch module
N = 256                   # batch of collocation points
LANES = 128               # fused/padded hidden width (3 * F <= 128)


# ----------------------------------------------------------------------------
# Slab layout (static row offsets, shared by packer and kernel).
# All offsets are multiples of 8 (tile-aligned static slices).
# ----------------------------------------------------------------------------
def slab_layout(n_layers):
    offs = {}
    r = 0

    def add(name, nrows):
        nonlocal r
        offs[name] = r
        r += nrows

    add("W0", 8)                     # fused layer-0 weight (8, 128), rows 0..2 live
    add("BIAS", 8)                   # rows 0..L-1: per-layer biases, L: bc1,
                                     # L+1: bc2, L+2: final weight, L+3 col0: final bias
    for l in range(1, n_layers):
        add(f"W{l}", LANES)          # block-diagonal hidden weight (128, 128)
    add("Wc1", LANES)                # combine1 (t/x halves stacked in rows 0:2F)
    add("Wc2", LANES)                # combine2 fused (rows 0:F act on c1, 2F:3F on y)
    return offs, r


# ----------------------------------------------------------------------------
# Kernel
# ----------------------------------------------------------------------------
def spinn_kernel(offs, n_layers, F, txy_ref, slab_ref, out_ref):
    def mat(name, rows=LANES):       # static, 8-aligned slices of the weight slab
        r = offs[name]
        return slab_ref[r:r + rows, :]

    W0 = mat("W0", 8)                # (8, 128)
    biases = mat("BIAS", 8)          # (8, 128): all biases + final head packed here

    inp = txy_ref[...]               # (8, tile_n): rows 0,1,2 = t, x, y

    # fused layer 0: contract the 8-row axis directly (trans-A form, no transpose)
    h = jnp.tanh(
        jax.lax.dot_general(inp, W0, (((0,), (0,)), ((), ())),
                            preferred_element_type=jnp.float32)
        + biases[0:1, :])            # (tile_n, 128)

    # fused hidden layers: block-diagonal (128,128) -> one matmul + one tanh each
    for l in range(1, n_layers):
        h = jnp.tanh(jnp.dot(h, mat(f"W{l}"),
                             preferred_element_type=jnp.float32)
                     + biases[l:l + 1, :])
    # h lanes: [0:F]=t_feat, [F:2F]=x_feat, [2F:3F]=y_feat, rest exactly 0

    # combine_layer1: tanh(cat([t_feat, x_feat]) @ W1 + b1)  (concat-free)
    c1 = jnp.tanh(jnp.dot(h, mat("Wc1"),
                          preferred_element_type=jnp.float32)
                  + biases[n_layers:n_layers + 1, :])
    # c1 is exactly 0 outside lanes [0:F)

    # combine_layer2, fused into ONE matmul:
    #   v = c1 (lanes 0:F) + y_feat (lanes 2F:3F), everything else zero
    lane = jax.lax.broadcasted_iota(jnp.int32, h.shape, 1)
    v = c1 + jnp.where((lane >= 2 * F) & (lane < 3 * F), h, 0.0)
    c2 = jnp.tanh(jnp.dot(v, mat("Wc2"),
                          preferred_element_type=jnp.float32)
                  + biases[n_layers + 1:n_layers + 2, :])

    # final head: contract over the lane axis (no c2 transpose), lane-dense store
    fin_w = biases[n_layers + 2:n_layers + 3, :]        # (1, 128), lanes 0:F live
    fin_b = biases[n_layers + 3:n_layers + 4, 0:1]      # (1, 1)
    out = jax.lax.dot_general(fin_w, c2, (((1,), (1,)), ((), ())),
                              preferred_element_type=jnp.float32) + fin_b
    out_ref[...] = out.astype(out_ref.dtype)            # (1, tile_n)


# ----------------------------------------------------------------------------
# Parameter init (deterministic, matches PyTorch nn.Linear shapes / bounds)
# ----------------------------------------------------------------------------
def init_params(key, features=FEATURES):
    keys = iter(jax.random.split(key, 64))

    def linear(fan_in, fan_out):
        bound = 1.0 / float(fan_in) ** 0.5
        W = jax.random.uniform(next(keys), (fan_in, fan_out), jnp.float32,
                               -bound, bound)
        b = jax.random.uniform(next(keys), (1, fan_out), jnp.float32,
                               -bound, bound)
        return W, b

    dims = [1] + list(features)
    nets = [[linear(dims[i], dims[i + 1]) for i in range(len(dims) - 1)]
            for _ in range(3)]
    F = features[-1]
    return {
        "nets": nets,
        "c1": linear(2 * F, F),
        "c2": linear(2 * F, F),
        "fin": linear(F, 1),
    }


def pack_slab(params, features=FEATURES):
    """Pack every weight/bias into one compressed (rows, 128) f32 slab."""
    F = features[-1]
    n_layers = len(features)
    assert all(f == F for f in features) and 3 * F <= LANES
    assert n_layers + 4 <= 8        # biases + head fit one 8-row block
    offs, total = slab_layout(n_layers)
    slab = jnp.zeros((total, LANES), jnp.float32)
    nets = params["nets"]

    W0 = jnp.zeros((8, LANES), jnp.float32)
    bias_blk = jnp.zeros((8, LANES), jnp.float32)

    # layer 0: rows 0..2 carry the three (1,F) weights into disjoint lane blocks
    for k in range(3):
        W, b = nets[k][0]
        W0 = W0.at[k, k * F:(k + 1) * F].set(W[0])
        bias_blk = bias_blk.at[0, k * F:(k + 1) * F].set(b[0])
    slab = slab.at[offs["W0"]:offs["W0"] + 8].set(W0)

    # hidden layers: block-diagonal fusion of the three (F,F) weights
    for l in range(1, n_layers):
        Wl = jnp.zeros((LANES, LANES), jnp.float32)
        for k in range(3):
            W, b = nets[k][l]
            Wl = Wl.at[k * F:(k + 1) * F, k * F:(k + 1) * F].set(W)
            bias_blk = bias_blk.at[l, k * F:(k + 1) * F].set(b[0])
        slab = slab.at[offs[f"W{l}"]:offs[f"W{l}"] + LANES].set(Wl)

    # combine layer 1: halves of the (2F,F) weight mapped onto t/x lane blocks
    c1_W, c1_b = params["c1"]
    Wc1 = jnp.zeros((LANES, LANES), jnp.float32)
    Wc1 = Wc1.at[0:F, 0:F].set(c1_W[:F])
    Wc1 = Wc1.at[F:2 * F, 0:F].set(c1_W[F:])
    bias_blk = bias_blk.at[n_layers, 0:F].set(c1_b[0])
    slab = slab.at[offs["Wc1"]:offs["Wc1"] + LANES].set(Wc1)

    # combine layer 2, fused: rows 0:F act on c1, rows 2F:3F act on y-features
    c2_W, c2_b = params["c2"]
    Wc2 = jnp.zeros((LANES, LANES), jnp.float32)
    Wc2 = Wc2.at[0:F, 0:F].set(c2_W[:F])
    Wc2 = Wc2.at[2 * F:3 * F, 0:F].set(c2_W[F:])
    bias_blk = bias_blk.at[n_layers + 1, 0:F].set(c2_b[0])
    slab = slab.at[offs["Wc2"]:offs["Wc2"] + LANES].set(Wc2)

    # final head packed into the shared bias block
    fin_W, fin_b = params["fin"]
    bias_blk = bias_blk.at[n_layers + 2, 0:F].set(fin_W[:, 0])
    bias_blk = bias_blk.at[n_layers + 3, 0].set(fin_b[0, 0])

    slab = slab.at[offs["BIAS"]:offs["BIAS"] + 8].set(bias_blk)
    return slab


# ----------------------------------------------------------------------------
# Wrapper
# ----------------------------------------------------------------------------
def spinn_forward(t, x, y, slab, features=FEATURES, tile_n=None):
    t, x, y = t.reshape(-1), x.reshape(-1), y.reshape(-1)
    n = t.shape[0]
    if tile_n is None:
        # two tiles -> both v7x TensorCores get work; one extra cheap grid
        # step on single-TC chips.  Raise tile_n for larger batches.
        tile_n = n // 2 if (n >= 256 and (n // 2) % 128 == 0) else n
    assert n % tile_n == 0 and tile_n % 128 == 0
    n_layers = len(features)
    F = features[-1]
    offs, total_rows = slab_layout(n_layers)
    assert slab.shape == (total_rows, LANES)

    # lane-dense (8, n) input: rows 0..2 = t, x, y; rows 3..7 zero (one stack+pad)
    txy = jnp.pad(jnp.stack([t, x, y]), ((0, 5), (0, 0)))

    out = pl.pallas_call(
        functools.partial(spinn_kernel, offs, n_layers, F),
        out_shape=jax.ShapeDtypeStruct((1, n), jnp.float32),
        grid=(n // tile_n,),
        in_specs=[
            pl.BlockSpec((8, tile_n), lambda i: (0, i)),
            pl.BlockSpec((total_rows, LANES), lambda i: (0, 0)),  # resident slab
        ],
        out_specs=pl.BlockSpec((1, tile_n), lambda i: (0, i)),
        compiler_params=pltpu.CompilerParams(
            dimension_semantics=("parallel",)),
    )(txy, slab)
    return out.reshape(n)             # squeeze(-1) equivalent


# ----------------------------------------------------------------------------
# Pure-JAX reference (mirrors the PyTorch forward exactly)
# ----------------------------------------------------------------------------
def spinn_reference(t, x, y, params, features=FEATURES):
    feats = []
    for inp, net in zip((t, x, y), params["nets"]):
        h = inp.reshape(-1, 1)
        for W, b in net:
            h = jnp.tanh(h @ W + b)
        feats.append(h)
    tf, xf, yf = feats
    c1_W, c1_b = params["c1"]
    c2_W, c2_b = params["c2"]
    fin_W, fin_b = params["fin"]
    c = jnp.tanh(jnp.concatenate([tf, xf], axis=1) @ c1_W + c1_b)
    c = jnp.tanh(jnp.concatenate([c, yf], axis=1) @ c2_W + c2_b)
    out = c @ fin_W + fin_b
    return out[:, 0]


if __name__ == "__main__":
    key = jax.random.PRNGKey(0)
    k_t, k_x, k_y, k_p = jax.random.split(key, 4)
    t = jax.random.uniform(k_t, (N,), jnp.float32)
    x = jax.random.uniform(k_x, (N,), jnp.float32)
    y = jax.random.uniform(k_y, (N,), jnp.float32)

    params = init_params(k_p, FEATURES)
    slab = pack_slab(params, FEATURES)

    out = spinn_forward(t, x, y, slab)
    out = jax.block_until_ready(out)

    ref = spinn_reference(t, x, y, params)
    assert out.shape == (N,), out.shape
    assert jnp.allclose(out, ref, atol=1e-5, rtol=1e-5), (
        float(jnp.max(jnp.abs(out - ref))))
    print("KERNEL_OK")
</pallas_src>

<mosaic_0001>
module attributes {stable_mosaic.version = 11 : i64} {
  func.func @spinn_kernel(%arg0: i32, %arg1: memref<8x128xf32, #tpu.memory_space<vmem>>, %arg2: memref<528x128xf32, #tpu.memory_space<vmem>>, %arg3: memref<1x128xf32, #tpu.memory_space<vmem>>) attributes {dimension_semantics = [#tpu.dimension_semantics<parallel>], iteration_bounds = array<i64: 2>, scalar_prefetch = 0 : i64, scratch_operands = 0 : i64, tpu.core_type = #tpu.core_type<tc>, window_params = [{transform_indices = @transform_0, window_bounds = array<i64: 8, 128>}, {pipeline_mode = #tpu.pipeline_mode<synchronous>, transform_indices = @transform_1, window_bounds = array<i64: 528, 128>}, {transform_indices = @transform_2, window_bounds = array<i64: 1, 128>}]} {
    %c0 = arith.constant 0 : index
    %c0_0 = arith.constant 0 : index
    %0 = vector.load %arg2[%c0, %c0_0] : memref<528x128xf32, #tpu.memory_space<vmem>>, vector<8x128xf32>
    %c8 = arith.constant 8 : index
    %c0_1 = arith.constant 0 : index
    %1 = vector.load %arg2[%c8, %c0_1] : memref<528x128xf32, #tpu.memory_space<vmem>>, vector<8x128xf32>
    %c0_2 = arith.constant 0 : index
    %c0_3 = arith.constant 0 : index
    %2 = vector.load %arg1[%c0_2, %c0_3] : memref<8x128xf32, #tpu.memory_space<vmem>>, vector<8x128xf32>
    %cst = arith.constant dense<0.000000e+00> : vector<128x128xf32>
    %3 = tpu.matmul %2, %0, %cst {dimension_numbers = #tpu.dot_dimension_numbers<[0], [0], [1], [1], [0, 1, 1, 1], [], []>} : vector<8x128xf32>, vector<8x128xf32>, vector<128x128xf32> -> vector<128x128xf32>
    %4 = vector.extract_strided_slice %1 {offsets = [0, 0], sizes = [1, 128], strides = [1, 1]} : vector<8x128xf32> to vector<1x128xf32>
    %5 = vector.broadcast %4 : vector<1x128xf32> to vector<128x128xf32>
    %6 = arith.addf %3, %5 : vector<128x128xf32>
    %7 = math.tanh %6 : vector<128x128xf32>
    %c16 = arith.constant 16 : index
    %c0_4 = arith.constant 0 : index
    %8 = vector.load %arg2[%c16, %c0_4] : memref<528x128xf32, #tpu.memory_space<vmem>>, vector<128x128xf32>
    %cst_5 = arith.constant dense<0.000000e+00> : vector<128x128xf32>
    %9 = tpu.matmul %7, %8, %cst_5 {dimension_numbers = #tpu.dot_dimension_numbers<[1], [0], [0], [1], [0, 0, 1, 1], [], []>} : vector<128x128xf32>, vector<128x128xf32>, vector<128x128xf32> -> vector<128x128xf32>
    %10 = vector.extract_strided_slice %1 {offsets = [1, 0], sizes = [1, 128], strides = [1, 1]} : vector<8x128xf32> to vector<1x128xf32>
    %11 = vector.broadcast %10 : vector<1x128xf32> to vector<128x128xf32>
    %12 = arith.addf %9, %11 : vector<128x128xf32>
    %13 = math.tanh %12 : vector<128x128xf32>
    %c144 = arith.constant 144 : index
    %c0_6 = arith.constant 0 : index
    %14 = vector.load %arg2[%c144, %c0_6] : memref<528x128xf32, #tpu.memory_space<vmem>>, vector<128x128xf32>
    %cst_7 = arith.constant dense<0.000000e+00> : vector<128x128xf32>
    %15 = tpu.matmul %13, %14, %cst_7 {dimension_numbers = #tpu.dot_dimension_numbers<[1], [0], [0], [1], [0, 0, 1, 1], [], []>} : vector<128x128xf32>, vector<128x128xf32>, vector<128x128xf32> -> vector<128x128xf32>
    %16 = vector.extract_strided_slice %1 {offsets = [2, 0], sizes = [1, 128], strides = [1, 1]} : vector<8x128xf32> to vector<1x128xf32>
    %17 = vector.broadcast %16 : vector<1x128xf32> to vector<128x128xf32>
    %18 = arith.addf %15, %17 : vector<128x128xf32>
    %19 = math.tanh %18 : vector<128x128xf32>
    %c272 = arith.constant 272 : index
    %c0_8 = arith.constant 0 : index
    %20 = vector.load %arg2[%c272, %c0_8] : memref<528x128xf32, #tpu.memory_space<vmem>>, vector<128x128xf32>
    %cst_9 = arith.constant dense<0.000000e+00> : vector<128x128xf32>
    %21 = tpu.matmul %19, %20, %cst_9 {dimension_numbers = #tpu.dot_dimension_numbers<[1], [0], [0], [1], [0, 0, 1, 1], [], []>} : vector<128x128xf32>, vector<128x128xf32>, vector<128x128xf32> -> vector<128x128xf32>
    %22 = vector.extract_strided_slice %1 {offsets = [3, 0], sizes = [1, 128], strides = [1, 1]} : vector<8x128xf32> to vector<1x128xf32>
    %23 = vector.broadcast %22 : vector<1x128xf32> to vector<128x128xf32>
    %24 = arith.addf %21, %23 : vector<128x128xf32>
    %25 = math.tanh %24 : vector<128x128xf32>
    %26 = tpu.iota {dimensions = array<i32: 1>} : vector<128x128xi32>
    %c64_i32 = arith.constant 64 : i32
    %27 = vector.broadcast %c64_i32 : i32 to vector<128x128xi32>
    %28 = arith.cmpi sge, %26, %27 : vector<128x128xi32>
    %c96_i32 = arith.constant 96 : i32
    %29 = vector.broadcast %c96_i32 : i32 to vector<128x128xi32>
    %30 = arith.cmpi slt, %26, %29 : vector<128x128xi32>
    %31 = arith.andi %28, %30 : vector<128x128xi1>
    %cst_10 = arith.constant 0.000000e+00 : f32
    %32 = vector.broadcast %cst_10 : f32 to vector<128x128xf32>
    %33 = arith.select %31, %19, %32 : vector<128x128xi1>, vector<128x128xf32>
    %34 = arith.addf %25, %33 : vector<128x128xf32>
    %c400 = arith.constant 400 : index
    %c0_11 = arith.constant 0 : index
    %35 = vector.load %arg2[%c400, %c0_11] : memref<528x128xf32, #tpu.memory_space<vmem>>, vector<128x128xf32>
    %cst_12 = arith.constant dense<0.000000e+00> : vector<128x128xf32>
    %36 = tpu.matmul %34, %35, %cst_12 {dimension_numbers = #tpu.dot_dimension_numbers<[1], [0], [0], [1], [0, 0, 1, 1], [], []>} : vector<128x128xf32>, vector<128x128xf32>, vector<128x128xf32> -> vector<128x128xf32>
    %37 = vector.extract_strided_slice %1 {offsets = [4, 0], sizes = [1, 128], strides = [1, 1]} : vector<8x128xf32> to vector<1x128xf32>
    %38 = vector.broadcast %37 : vector<1x128xf32> to vector<128x128xf32>
    %39 = arith.addf %36, %38 : vector<128x128xf32>
    %40 = math.tanh %39 : vector<128x128xf32>
    %41 = vector.extract_strided_slice %1 {offsets = [5, 0], sizes = [1, 128], strides = [1, 1]} : vector<8x128xf32> to vector<1x128xf32>
    %42 = vector.extract_strided_slice %1 {offsets = [6, 0], sizes = [1, 1], strides = [1, 1]} : vector<8x128xf32> to vector<1x1xf32>
    %cst_13 = arith.constant dense<0.000000e+00> : vector<1x128xf32>
    %43 = tpu.matmul %41, %40, %cst_13 {dimension_numbers = #tpu.dot_dimension_numbers<[1], [1], [0], [0], [0, 0, 1, 0], [], []>} : vector<1x128xf32>, vector<128x128xf32>, vector<1x128xf32> -> vector<1x128xf32>
    %44 = vector.broadcast %42 : vector<1x1xf32> to vector<1x128xf32>
    %45 = arith.addf %43, %44 : vector<1x128xf32>
    %c0_14 = arith.constant 0 : index
    %c0_15 = arith.constant 0 : index
    %46 = vector.load %arg3[%c0_14, %c0_15] : memref<1x128xf32, #tpu.memory_space<vmem>>, vector<1x128xf32>
    tpu.vector_store %arg3[%c0_14, %c0_15], %45 {strides = array<i32>} : memref<1x128xf32, #tpu.memory_space<vmem>>, vector<1x128xf32>,
    return
  }
  func.func @transform_0(%arg0: i32) -> (i32, i32) {
    %c0_i32 = arith.constant 0 : i32
    %c0_i32_0 = arith.constant 0 : i32
    return %c0_i32, %arg0 : i32, i32
  }
  func.func @transform_1(%arg0: i32) -> (i32, i32) {
    %c0_i32 = arith.constant 0 : i32
    %c0_i32_0 = arith.constant 0 : i32
    %c0_i32_1 = arith.constant 0 : i32
    return %c0_i32, %c0_i32_0 : i32, i32
  }
  func.func @transform_2(%arg0: i32) -> (i32, i32) {
    %c0_i32 = arith.constant 0 : i32
    %c0_i32_0 = arith.constant 0 : i32
    return %c0_i32, %arg0 : i32, i32
  }
}

</mosaic_0001>

<llo_original>
// kernel: tpu_custom_call.1
$region0: #{tpu_custom_call.1}
  #allocation0 [shape = 'u32[]', space=smem, size = 0x4, offset = 0x4, fixed_abs, tag = 'smem constant byte address 0x4 - core index']
  #allocation1 [shape = 'u32[144,128]{1,0:T(1,128)}', space=vmem, size = 0x12000, scoped, tag = 'internal scratch']
  %s0 = inlined_call_operand.hbm [shape: f32[8,256], index: 0, kind: input, shape index: {}]
  %s1 = inlined_call_operand.hbm [shape: f32[528,128], index: 1, kind: input, shape index: {}]
  %s2 = inlined_call_operand.hbm [shape: f32[1,256], index: 2, kind: output, shape index: {}]
  %s3 = sld [smem:[#allocation0]]
  $region49: #{tpu_custom_call.1} parent=0
    _
  %s5 = ssub.s32 1, %s3
  %s6 = scalar_select 0, %s5, %s3
  $region1: #{tpu_custom_call.1} parent=0
    #allocation2 [shape = 'u8[8192]{0}', space=vmem, size = 0x2000, scoped, tag = 'input window, operand 0']
    #allocation3 [shape = 's32[2]{0}', space=sflag, size = 0x8, scoped, tag = 'scoped memory for tpu_custom_call.1']
    #allocation4 [shape = 's32[2]{0}', space=sflag, size = 0x8, scoped, tag = 'scoped memory for tpu_custom_call.1']
    #allocation5 [shape = 'u8[270336]{0}', space=vmem, size = 0x42000, scoped, tag = 'input window, operand 1, single buffered']
    #allocation6 [shape = 's32[1]{0}', space=sflag, size = 0x4, scoped, tag = 'scoped memory for tpu_custom_call.1']
    #allocation7 [shape = 'u8[1024]{0}', space=vmem, size = 0x400, scoped, tag = 'output window, operand 0']
    %7 = vsyncpa [#allocation3], 0
    %s8 = scalar_lea.sflag [#allocation3], 1
    %9 = vsyncpa %s8, 0
    %10 = vsyncpa [#allocation6], 0
    %11 = vsyncpa [#allocation4], 0
    %s12 = scalar_lea.sflag [#allocation4], 1
    %13 = vsyncpa %s12, 0
    loop: start=0, step=1, limit=4
    $region2: #{tpu_custom_call.1} parent=1 // loop_pre_header
      _
    $region3: #{tpu_custom_call.1} parent=1 // loop_header
      %s15 = sphi 0, %s19
      %p16 = scmp.ge.s32.totalorder %s15, 4
      %s25 = sphi 0, %s27
      %s28 = sphi 0, %s25
      %s29 = sphi 0, %s28
      %s45 = sphi 0, %s29
      %s49 = sphi 0, %s49
      %s51 = sphi 0, %s49
      %s52 = sphi 0, %s51
      %s66 = sphi 0, %s52
      %s72 = sphi 0, %s74
      %s75 = sphi 0, %s72
      %s76 = sphi 0, %s75
      %s92 = sphi 0, %s76
    $region4: #{tpu_custom_call.1} parent=1 // loop_header_branch
      %18 = sbr.rel (%p16) target = $region8
    $region5: #{tpu_custom_call.1} parent=1 // loop_body
      %s20 = ssub.s32 %s15, 1
      %s21 = ssub.s32 %s15, 2
      %s22 = sadd.s32 %s15, 1
      %s23 = ssub.s32 %s15, %s22
      %p24 = scmp.eq.s32.totalorder %s23, 0
      %s26 = sadd.s32 %s25, 1
      %s27 = scalar_select %p24, %s25, %s26
      %p30 = pneg %p24
      %p31 = scmp.eq.s32.totalorder %s15, 1
      %p32 = por %p30, %p31
      %p33 = scmp.ne.s32.totalorder %s25, %s28
      %p34 = scmp.eq.s32.totalorder %s15, 0
      %p35 = por %p33, %p34
      %p36 = scmp.ne.s32.totalorder %s25, %s28
      %p37 = scmp.eq.s32.totalorder %s20, 1
      %p38 = por %p36, %p37
      %p39 = scmp.ne.s32.totalorder %s28, %s29
      %p40 = scmp.eq.s32.totalorder %s20, 0
      %p41 = por %p39, %p40
      %p42 = scmp.ne.s32.totalorder %s28, %s29
      %p43 = scmp.eq.s32.totalorder %s21, 1
      %p44 = por %p42, %p43
      %p46 = scmp.ne.s32.totalorder %s29, %s45
      %p47 = scmp.eq.s32.totalorder %s21, 0
      %p48 = por %p46, %p47
      %s50 = sadd.s32 %s49, 1
      %p53 = scmp.eq.s32.totalorder %s15, 1
      %p54 = scmp.ne.s32.totalorder %s49, %s51
      %p55 = scmp.eq.s32.totalorder %s15, 0
      %p56 = por %p54, %p55
      %p57 = scmp.ne.s32.totalorder %s49, %s51
      %p58 = scmp.eq.s32.totalorder %s20, 1
      %p59 = por %p57, %p58
      %p60 = scmp.ne.s32.totalorder %s51, %s52
      %p61 = scmp.eq.s32.totalorder %s20, 0
      %p62 = por %p60, %p61
      %p63 = scmp.ne.s32.totalorder %s51, %s52
      %p64 = scmp.eq.s32.totalorder %s21, 1
      %p65 = por %p63, %p64
      %p67 = scmp.ne.s32.totalorder %s52, %s66
      %p68 = scmp.eq.s32.totalorder %s21, 0
      %p69 = por %p67, %p68
      %s70 = ssub.s32 %s15, %s22
      %p71 = scmp.eq.s32.totalorder %s70, 0
      %s73 = sadd.s32 %s72, 1
      %s74 = scalar_select %p71, %s72, %s73
      %p77 = pneg %p71
      %p78 = scmp.eq.s32.totalorder %s15, 1
      %p79 = por %p77, %p78
      %p80 = scmp.ne.s32.totalorder %s72, %s75
      %p81 = scmp.eq.s32.totalorder %s15, 0
      %p82 = por %p80, %p81
      %p83 = scmp.ne.s32.totalorder %s72, %s75
      %p84 = scmp.eq.s32.totalorder %s20, 1
      %p85 = por %p83, %p84
      %p86 = scmp.ne.s32.totalorder %s75, %s76
      %p87 = scmp.eq.s32.totalorder %s20, 0
      %p88 = por %p86, %p87
      %p89 = scmp.ne.s32.totalorder %s75, %s76
      %p90 = scmp.eq.s32.totalorder %s21, 1
      %p91 = por %p89, %p90
      %p93 = scmp.ne.s32.totalorder %s76, %s92
      %p94 = scmp.eq.s32.totalorder %s21, 0
      %p95 = por %p93, %p94
      %p96 = scmp.le.s32.totalorder 1, %s15
      %p97 = scmp.lt.s32.totalorder %s15, 3
      %p98 = pnand %p96, %p97
      %p99 = pneg %p98
      // Predicated region
      $region9: #{tpu_custom_call.1} parent=5 // pred_check
        _
      $region10: #{tpu_custom_call.1} parent=5 // pred_check_branch
        %101 = sbr.rel (%p98) target = $region12
      $region11: #{tpu_custom_call.1} parent=5 // pred_region
        %s102 = ssub.s32 %s15, 1
        // Predicated region
        $region13: #{tpu_custom_call.1} parent=11 // pred_check
          %p103 = pneg %p62
        $region14: #{tpu_custom_call.1} parent=11 // pred_check_branch
          %105 = sbr.rel (%p103) target = $region16
        $region15: #{tpu_custom_call.1} parent=11 // pred_region
          %s107 = ssub.s32 8448, 8448
          %108 = vsyncadd [#allocation6], %s107
          %s109 = sshll.u32 [#allocation5], 4
          %s110 = int_to_ptr.vmem [resolvable:$true] %s109
          %115 = dma.hbm_to_vmem [thread:$0]  %s1, 8448, %s110, [#allocation6], 128, 128, 8
        $region16: #{tpu_custom_call.1} parent=11 // pred_fallthru
          _
      $region12: #{tpu_custom_call.1} parent=5 // pred_fallthru
        _
      %p116 = scmp.lt.s32.totalorder %s15, 2
      // Predicated region
      $region17: #{tpu_custom_call.1} parent=5 // pred_check
        %p117 = pneg %p116
      $region18: #{tpu_custom_call.1} parent=5 // pred_check_branch
        %119 = sbr.rel (%p117) target = $region20
      $region19: #{tpu_custom_call.1} parent=5 // pred_region
        // Predicated region
        $region21: #{tpu_custom_call.1} parent=19 // pred_check
          %p120 = pneg %p35
        $region22: #{tpu_custom_call.1} parent=19 // pred_check_branch
          %122 = sbr.rel (%p120) target = $region24
        $region23: #{tpu_custom_call.1} parent=19 // pred_region
          %s123 = sand.u32 %s25, 1
          %s124 = scalar_lea.sflag [#allocation3], %s123
          %s125 = sand.u32 %s25, 1
          %s126 = smul.addr %s125, 8
          %s127 = scalar_lea.vmem [#allocation2], %s126
          %s129 = ssub.s32 128, 128
          %130 = vsyncadd %s124, %s129
          %s131 = smul.addr %s15, 128
          %s132 = scalar_lea.hbm %s0, %s131
          %s134 = sshll.u32 %s127, 4
          %s135 = int_to_ptr.vmem [resolvable:$true] %s134
          %137 = dma.hbm_to_vmem [thread:$0]  %s132, 128, %s135, %s124
        $region24: #{tpu_custom_call.1} parent=19 // pred_fallthru
          _
      $region20: #{tpu_custom_call.1} parent=5 // pred_fallthru
        _
      %p138 = scmp.le.s32.totalorder 1, %s15
      %p139 = scmp.lt.s32.totalorder %s15, 3
      %p140 = pnand %p138, %p139
      %p141 = pneg %p140
      // Predicated region
      $region25: #{tpu_custom_call.1} parent=5 // pred_check
        _
      $region26: #{tpu_custom_call.1} parent=5 // pred_check_branch
        %143 = sbr.rel (%p140) target = $region28
      $region27: #{tpu_custom_call.1} parent=5 // pred_region
        %s144 = ssub.s32 %s15, 1
        %s145 = sand.u32 %s28, 1
        %s146 = scalar_lea.sflag [#allocation3], %s145
        %s147 = sand.u32 %s28, 1
        %s148 = smul.addr %s147, 8
        %s149 = scalar_lea.vmem [#allocation2], %s148
        // Predicated region
        $region29: #{tpu_custom_call.1} parent=27 // pred_check
          %p150 = pneg %p41
        $region30: #{tpu_custom_call.1} parent=27 // pred_check_branch
          %152 = sbr.rel (%p150) target = $region32
        $region31: #{tpu_custom_call.1} parent=27 // pred_region
          %153 = dma.done %s146, 128
        $region32: #{tpu_custom_call.1} parent=27 // pred_fallthru
          _
        // Predicated region
        $region33: #{tpu_custom_call.1} parent=27 // pred_check
          %p154 = pneg %p62
        $region34: #{tpu_custom_call.1} parent=27 // pred_check_branch
          %156 = sbr.rel (%p154) target = $region36
        $region35: #{tpu_custom_call.1} parent=27 // pred_region
          %157 = dma.done [#allocation6], 8448
        $region36: #{tpu_custom_call.1} parent=27 // pred_fallthru
          _
        %s158 = sand.u32 %s28, 1
        %s159 = scalar_lea.sflag [#allocation3], %s158
        %s160 = sand.u32 %s28, 1
        %s161 = smul.addr %s160, 8
        %s162 = scalar_lea.vmem [#allocation2], %s161
        %p163 = pneg %p41
        %p164 = pneg %p38
        %p165 = pneg %p62
        %p166 = pneg %p59
        %p167 = pneg %p88
        %p168 = pneg %p85
        %s169 = sand.u32 %s75, 1
        %s170 = scalar_lea.sflag [#allocation4], %s169
        %s171 = sand.u32 %s75, 1
        %s172 = scalar_lea.vmem [#allocation7], %s171
        %v173 = vld [vmem:[#allocation5] sm:$0xff]
        %v174 = vld [vmem:[#allocation5 + $0x8] sm:$0xff]
        %v175 = vld [vmem:[%s149] sm:$0xff]
        %v176 = vlaneseq
        %v177 = vshrl.u32 %v176, 7
        %v178 = vsub.s32 0, %v177
        %v179 = vrot.slane %v174, %v178
        %180 = vxpose.xlu0.b32.start [1/16] %v175, 128
        %181 = vxpose.xlu0.b32.cont [2/16] 0.0, 128
        %182 = vxpose.xlu0.b32.cont [3/16] 0.0, 128
        %183 = vxpose.xlu0.b32.cont [4/16] 0.0, 128
        %184 = vxpose.xlu0.b32.cont [5/16] 0.0, 128
        %185 = vxpose.xlu0.b32.cont [6/16] 0.0, 128
        %186 = vxpose.xlu0.b32.cont [7/16] 0.0, 128
        %187 = vxpose.xlu0.b32.cont [8/16] 0.0, 128
        %188 = vxpose.xlu0.b32.cont [9/16] 0.0, 128
        %189 = vxpose.xlu0.b32.cont [10/16] 0.0, 128
        %190 = vxpose.xlu0.b32.cont [11/16] 0.0, 128
        %191 = vxpose.xlu0.b32.cont [12/16] 0.0, 128
        %192 = vxpose.xlu0.b32.cont [13/16] 0.0, 128
        %193 = vxpose.xlu0.b32.cont [14/16] 0.0, 128
        %194 = vxpose.xlu0.b32.cont [15/16] 0.0, 128
        %195 = vxpose.xlu0.b32.end [16/16] 0.0, 128
        %v196 = vpop.trf.xlu0
        %v197 = vpop.trf.xlu0
        %v198 = vpop.trf.xlu0
        %v199 = vpop.trf.xlu0
        %v200 = vpop.trf.xlu0
        %v201 = vpop.trf.xlu0
        %v202 = vpop.trf.xlu0
        %v203 = vpop.trf.xlu0
        %v204 = vpop.trf.xlu0
        %v205 = vpop.trf.xlu0
        %v206 = vpop.trf.xlu0
        %v207 = vpop.trf.xlu0
        %v208 = vpop.trf.xlu0
        %v209 = vpop.trf.xlu0
        %v210 = vpop.trf.xlu0
        %v211 = vpop.trf.xlu0
        %vm212 = vcmask 64512
        %v214 = vsel %vm212, %v196, 0
        %v217 = vsel %vm212, %v197, 0
        %v220 = vsel %vm212, %v198, 0
        %v223 = vsel %vm212, %v199, 0
        %v226 = vsel %vm212, %v200, 0
        %v229 = vsel %vm212, %v201, 0
        %v232 = vsel %vm212, %v202, 0
        %v235 = vsel %vm212, %v203, 0
        %v238 = vsel %vm212, %v204, 0
        %v241 = vsel %vm212, %v205, 0
        %v244 = vsel %vm212, %v206, 0
        %v247 = vsel %vm212, %v207, 0
        %v250 = vsel %vm212, %v208, 0
        %v253 = vsel %vm212, %v209, 0
        %v256 = vsel %vm212, %v210, 0
        %v259 = vsel %vm212, %v211, 0
        %261 = vmatprep.subr.mxu0 0.0
        %262 = vmatpush1.msra.mxu0 0.0
        %263 = vmatprep.subr.mxu0 0.0
        %264 = vmatpush1.msra.mxu0 0.0
        %265 = vmatprep.subr.mxu0 0.0
        %266 = vmatpush1.msra.mxu0 0.0
        %267 = vmatprep.subr.mxu0 0.0
        %268 = vmatpush1.msra.mxu0 0.0
        %269 = vmatprep.subr.mxu0 0.0
        %270 = vmatpush1.msra.mxu0 0.0
        %271 = vmatprep.subr.mxu0 0.0
        %272 = vmatpush1.msra.mxu0 0.0
        %273 = vmatprep.subr.mxu0 0.0
        %274 = vmatpush1.msra.mxu0 0.0
        %275 = vmatprep.subr.mxu0 0.0
        %276 = vmatpush1.msra.mxu0 0.0
        %277 = vmatprep.subr.mxu0 0.0
        %278 = vmatpush1.msra.mxu0 0.0
        %279 = vmatprep.subr.mxu0 0.0
        %280 = vmatpush1.msra.mxu0 0.0
        %281 = vmatprep.subr.mxu0 0.0
        %282 = vmatpush1.msra.mxu0 0.0
        %283 = vmatprep.subr.mxu0 0.0
        %284 = vmatpush1.msra.mxu0 0.0
        %285 = vmatprep.subr.mxu0 0.0
        %286 = vmatpush1.msra.mxu0 0.0
        %287 = vmatprep.subr.mxu0 0.0
        %288 = vmatpush1.msra.mxu0 0.0
        %289 = vmatprep.subr.mxu0 0.0
        %290 = vmatpush1.msra.mxu0 0.0
        %291 = vmatprep.subr.mxu0 0.0
        %292 = vmatpush1.msra.mxu0 %v173
        %293 = vmatprep.subr.mxu0 0.0
        %294 = vmatpush2.msra.mxu0 0.0
        %295 = vmatprep.subr.mxu0 0.0
        %296 = vmatpush2.msra.mxu0 0.0
        %297 = vmatprep.subr.mxu0 0.0
        %298 = vmatpush2.msra.mxu0 0.0
        %299 = vmatprep.subr.mxu0 0.0
        %300 = vmatpush2.msra.mxu0 0.0
        %301 = vmatprep.subr.mxu0 0.0
        %302 = vmatpush2.msra.mxu0 0.0
        %303 = vmatprep.subr.mxu0 0.0
        %304 = vmatpush2.msra.mxu0 0.0
        %305 = vmatprep.subr.mxu0 0.0
        %306 = vmatpush2.msra.mxu0 0.0
        %307 = vmatprep.subr.mxu0 0.0
        %308 = vmatpush2.msra.mxu0 0.0
        %309 = vmatprep.subr.mxu0 0.0
        %310 = vmatpush2.msra.mxu0 0.0
        %311 = vmatprep.subr.mxu0 0.0
        %312 = vmatpush2.msra.mxu0 0.0
        %313 = vmatprep.subr.mxu0 0.0
        %314 = vmatpush2.msra.mxu0 0.0
        %315 = vmatprep.subr.mxu0 0.0
        %316 = vmatpush2.msra.mxu0 0.0
        %317 = vmatprep.subr.mxu0 0.0
        %318 = vmatpush2.msra.mxu0 0.0
        %319 = vmatprep.subr.mxu0 0.0
        %320 = vmatpush2.msra.mxu0 0.0
        %321 = vmatprep.subr.mxu0 0.0
        %322 = vmatpush2.msra.mxu0 0.0
        %323 = vmatprep.subr.mxu0 0.0
        %324 = vmatpush2.msra.mxu0 0.0
        %325 = vmatprep.mubr.f32.mxu0 0.0
        %326 = vmatmul.mubr.f32.gmra.mxu0 %v214
        %v327 = vpop.f32.mrf.mxu0
        %v328 = vadd.f32 %v179, %v327
        %v329 = vpop.f32.mrf.mxu0
        %330 = vmatprep.mubr.f32.mxu0 0.0
        %331 = vmatmul.mubr.f32.gmra.mxu0 %v217
        %v332 = vpop.f32.mrf.mxu0
        %v333 = vadd.f32 %v179, %v332
        %v334 = vpop.f32.mrf.mxu0
        %335 = vmatprep.mubr.f32.mxu0 0.0
        %336 = vmatmul.mubr.f32.gmra.mxu0 %v220
        %v337 = vpop.f32.mrf.mxu0
        %v338 = vadd.f32 %v179, %v337
        %v339 = vpop.f32.mrf.mxu0
        %340 = vmatprep.mubr.f32.mxu0 0.0
        %341 = vmatmul.mubr.f32.gmra.mxu0 %v223
        %v342 = vpop.f32.mrf.mxu0
        %v343 = vadd.f32 %v179, %v342
        %v344 = vpop.f32.mrf.mxu0
        %345 = vmatprep.mubr.f32.mxu0 0.0
        %346 = vmatmul.mubr.f32.gmra.mxu0 %v226
        %v347 = vpop.f32.mrf.mxu0
        %v348 = vadd.f32 %v179, %v347
        %v349 = vpop.f32.mrf.mxu0
        %350 = vmatprep.mubr.f32.mxu0 0.0
        %351 = vmatmul.mubr.f32.gmra.mxu0 %v229
        %v352 = vpop.f32.mrf.mxu0
        %v353 = vadd.f32 %v179, %v352
        %v354 = vpop.f32.mrf.mxu0
        %355 = vmatprep.mubr.f32.mxu0 0.0
        %356 = vmatmul.mubr.f32.gmra.mxu0 %v232
        %v357 = vpop.f32.mrf.mxu0
        %v358 = vadd.f32 %v179, %v357
        %v359 = vpop.f32.mrf.mxu0
        %360 = vmatprep.mubr.f32.mxu0 0.0
        %361 = vmatmul.mubr.f32.gmra.mxu0 %v235
        %v362 = vpop.f32.mrf.mxu0
        %v363 = vadd.f32 %v179, %v362
        %v364 = vpop.f32.mrf.mxu0
        %365 = vmatprep.mubr.f32.mxu0 0.0
        %366 = vmatmul.mubr.f32.gmra.mxu0 %v238
        %v367 = vpop.f32.mrf.mxu0
        %v368 = vadd.f32 %v179, %v367
        %v369 = vpop.f32.mrf.mxu0
        %370 = vmatprep.mubr.f32.mxu0 0.0
        %371 = vmatmul.mubr.f32.gmra.mxu0 %v241
        %v372 = vpop.f32.mrf.mxu0
        %v373 = vadd.f32 %v179, %v372
        %v374 = vpop.f32.mrf.mxu0
        %375 = vmatprep.mubr.f32.mxu0 0.0
        %376 = vmatmul.mubr.f32.gmra.mxu0 %v244
        %v377 = vpop.f32.mrf.mxu0
        %v378 = vadd.f32 %v179, %v377
        %v379 = vpop.f32.mrf.mxu0
        %380 = vmatprep.mubr.f32.mxu0 0.0
        %381 = vmatmul.mubr.f32.gmra.mxu0 %v247
        %v382 = vpop.f32.mrf.mxu0
        %v383 = vadd.f32 %v179, %v382
        %v384 = vpop.f32.mrf.mxu0
        %385 = vmatprep.mubr.f32.mxu0 0.0
        %386 = vmatmul.mubr.f32.gmra.mxu0 %v250
        %v387 = vpop.f32.mrf.mxu0
        %v388 = vadd.f32 %v179, %v387
        %v389 = vpop.f32.mrf.mxu0
        %390 = vmatprep.mubr.f32.mxu0 0.0
        %391 = vmatmul.mubr.f32.gmra.mxu0 %v253
        %v392 = vpop.f32.mrf.mxu0
        %v393 = vadd.f32 %v179, %v392
        %v394 = vpop.f32.mrf.mxu0
        %395 = vmatprep.mubr.f32.mxu0 0.0
        %396 = vmatmul.mubr.f32.gmra.mxu0 %v256
        %v397 = vpop.f32.mrf.mxu0
        %v398 = vadd.f32 %v179, %v397
        %v399 = vpop.f32.mrf.mxu0
        %400 = vmatprep.mubr.f32.mxu0 0.0
        %401 = vmatmul.mubr.f32.gmra.mxu0 %v259
        %v402 = vpop.f32.mrf.mxu0
        %v403 = vadd.f32 %v179, %v402
        %v404 = vpop.f32.mrf.mxu0
        %405 = vdwg.mxu0
        %v406 = vtanh.pop %v328
        %v407 = vtanh.pop %v333
        %v408 = vtanh.pop %v338
        %v409 = vtanh.pop %v343
        %v410 = vtanh.pop %v348
        %v411 = vtanh.pop %v353
        %v412 = vtanh.pop %v358
        %v413 = vtanh.pop %v363
        %v414 = vtanh.pop %v368
        %v415 = vtanh.pop %v373
        %v416 = vtanh.pop %v378
        %v417 = vtanh.pop %v383
        %v418 = vtanh.pop %v388
        %v419 = vtanh.pop %v393
        %v420 = vtanh.pop %v398
        %v421 = vtanh.pop %v403
        %v422 = vld [vmem:[#allocation5 + $0x10] sm:$0xff]
        %v423 = vld [vmem:[#allocation5 + $0x18] sm:$0xff]
        %v424 = vld [vmem:[#allocation5 + $0x20] sm:$0xff]
        %v425 = vld [vmem:[#allocation5 + $0x28] sm:$0xff]
        %v426 = vld [vmem:[#allocation5 + $0x30] sm:$0xff]
        %v427 = vld [vmem:[#allocation5 + $0x38] sm:$0xff]
        %v428 = vld [vmem:[#allocation5 + $0x40] sm:$0xff]
        %v429 = vld [vmem:[#allocation5 + $0x48] sm:$0xff]
        %v430 = vld [vmem:[#allocation5 + $0x50] sm:$0xff]
        %v431 = vld [vmem:[#allocation5 + $0x58] sm:$0xff]
        %v432 = vld [vmem:[#allocation5 + $0x60] sm:$0xff]
        %v433 = vld [vmem:[#allocation5 + $0x68] sm:$0xff]
        %v434 = vld [vmem:[#allocation5 + $0x70] sm:$0xff]
        %v435 = vld [vmem:[#allocation5 + $0x78] sm:$0xff]
        %v436 = vld [vmem:[#allocation5 + $0x80] sm:$0xff]
        %v437 = vld [vmem:[#allocation5 + $0x88] sm:$0xff]
        %v438 = vlaneseq
        %v439 = vshrl.u32 %v438, 7
        %v440 = vsub.s32 1, %v439
        %v441 = vrot.slane %v174, %v440
        %442 = vmatprep.subr.mxu0 0.0
        %443 = vmatpush1.msra.mxu0 %v437
        %444 = vmatprep.subr.mxu0 0.0
        %445 = vmatpush1.msra.mxu0 %v436
        %446 = vmatprep.subr.mxu0 0.0
        %447 = vmatpush1.msra.mxu0 %v435
        %448 = vmatprep.subr.mxu0 0.0
        %449 = vmatpush1.msra.mxu0 %v434
        %450 = vmatprep.subr.mxu0 0.0
        %451 = vmatpush1.msra.mxu0 %v433
        %452 = vmatprep.subr.mxu0 0.0
        %453 = vmatpush1.msra.mxu0 %v432
        %454 = vmatprep.subr.mxu0 0.0
        %455 = vmatpush1.msra.mxu0 %v431
        %456 = vmatprep.subr.mxu0 0.0
        %457 = vmatpush1.msra.mxu0 %v430
        %458 = vmatprep.subr.mxu0 0.0
        %459 = vmatpush1.msra.mxu0 %v429
        %460 = vmatprep.subr.mxu0 0.0
        %461 = vmatpush1.msra.mxu0 %v428
        %462 = vmatprep.subr.mxu0 0.0
        %463 = vmatpush1.msra.mxu0 %v427
        %464 = vmatprep.subr.mxu0 0.0
        %465 = vmatpush1.msra.mxu0 %v426
        %466 = vmatprep.subr.mxu0 0.0
        %467 = vmatpush1.msra.mxu0 %v425
        %468 = vmatprep.subr.mxu0 0.0
        %469 = vmatpush1.msra.mxu0 %v424
        %470 = vmatprep.subr.mxu0 0.0
        %471 = vmatpush1.msra.mxu0 %v423
        %472 = vmatprep.subr.mxu0 0.0
        %473 = vmatpush1.msra.mxu0 %v422
        %474 = vmatprep.subr.mxu0 0.0
        %475 = vmatpush2.msra.mxu0 0.0
        %476 = vmatprep.subr.mxu0 0.0
        %477 = vmatpush2.msra.mxu0 0.0
        %478 = vmatprep.subr.mxu0 0.0
        %479 = vmatpush2.msra.mxu0 0.0
        %480 = vmatprep.subr.mxu0 0.0
        %481 = vmatpush2.msra.mxu0 0.0
        %482 = vmatprep.subr.mxu0 0.0
        %483 = vmatpush2.msra.mxu0 0.0
        %484 = vmatprep.subr.mxu0 0.0
        %485 = vmatpush2.msra.mxu0 0.0
        %486 = vmatprep.subr.mxu0 0.0
        %487 = vmatpush2.msra.mxu0 0.0
        %488 = vmatprep.subr.mxu0 0.0
        %489 = vmatpush2.msra.mxu0 0.0
        %490 = vmatprep.subr.mxu0 0.0
        %491 = vmatpush2.msra.mxu0 0.0
        %492 = vmatprep.subr.mxu0 0.0
        %493 = vmatpush2.msra.mxu0 0.0
        %494 = vmatprep.subr.mxu0 0.0
        %495 = vmatpush2.msra.mxu0 0.0
        %496 = vmatprep.subr.mxu0 0.0
        %497 = vmatpush2.msra.mxu0 0.0
        %498 = vmatprep.subr.mxu0 0.0
        %499 = vmatpush2.msra.mxu0 0.0
        %500 = vmatprep.subr.mxu0 0.0
        %501 = vmatpush2.msra.mxu0 0.0
        %502 = vmatprep.subr.mxu0 0.0
        %503 = vmatpush2.msra.mxu0 0.0
        %504 = vmatprep.subr.mxu0 0.0
        %505 = vmatpush2.msra.mxu0 0.0
        %506 = vmatprep.mubr.f32.mxu0 0.0
        %507 = vmatmul.mubr.f32.gmra.mxu0 %v406
        %v508 = vpop.f32.mrf.mxu0
        %v509 = vadd.f32 %v441, %v508
        %v510 = vpop.f32.mrf.mxu0
        %511 = vmatprep.mubr.f32.mxu0 0.0
        %512 = vmatmul.mubr.f32.gmra.mxu0 %v407
        %v513 = vpop.f32.mrf.mxu0
        %v514 = vadd.f32 %v441, %v513
        %v515 = vpop.f32.mrf.mxu0
        %516 = vmatprep.mubr.f32.mxu0 0.0
        %517 = vmatmul.mubr.f32.gmra.mxu0 %v408
        %v518 = vpop.f32.mrf.mxu0
        %v519 = vadd.f32 %v441, %v518
        %v520 = vpop.f32.mrf.mxu0
        %521 = vmatprep.mubr.f32.mxu0 0.0
        %522 = vmatmul.mubr.f32.gmra.mxu0 %v409
        %v523 = vpop.f32.mrf.mxu0
        %v524 = vadd.f32 %v441, %v523
        %v525 = vpop.f32.mrf.mxu0
        %526 = vmatprep.mubr.f32.mxu0 0.0
        %527 = vmatmul.mubr.f32.gmra.mxu0 %v410
        %v528 = vpop.f32.mrf.mxu0
        %v529 = vadd.f32 %v441, %v528
        %v530 = vpop.f32.mrf.mxu0
        %531 = vmatprep.mubr.f32.mxu0 0.0
        %532 = vmatmul.mubr.f32.gmra.mxu0 %v411
        %v533 = vpop.f32.mrf.mxu0
        %v534 = vadd.f32 %v441, %v533
        %v535 = vpop.f32.mrf.mxu0
        %536 = vmatprep.mubr.f32.mxu0 0.0
        %537 = vmatmul.mubr.f32.gmra.mxu0 %v412
        %v538 = vpop.f32.mrf.mxu0
        %v539 = vadd.f32 %v441, %v538
        %v540 = vpop.f32.mrf.mxu0
        %541 = vmatprep.mubr.f32.mxu0 0.0
        %542 = vmatmul.mubr.f32.gmra.mxu0 %v413
        %v543 = vpop.f32.mrf.mxu0
        %v544 = vadd.f32 %v441, %v543
        %v545 = vpop.f32.mrf.mxu0
        %546 = vmatprep.mubr.f32.mxu0 0.0
        %547 = vmatmul.mubr.f32.gmra.mxu0 %v414
        %v548 = vpop.f32.mrf.mxu0
        %v549 = vadd.f32 %v441, %v548
        %v550 = vpop.f32.mrf.mxu0
        %551 = vmatprep.mubr.f32.mxu0 0.0
        %552 = vmatmul.mubr.f32.gmra.mxu0 %v415
        %v553 = vpop.f32.mrf.mxu0
        %v554 = vadd.f32 %v441, %v553
        %v555 = vpop.f32.mrf.mxu0
        %556 = vmatprep.mubr.f32.mxu0 0.0
        %557 = vmatmul.mubr.f32.gmra.mxu0 %v416
        %v558 = vpop.f32.mrf.mxu0
        %v559 = vadd.f32 %v441, %v558
        %v560 = vpop.f32.mrf.mxu0
        %561 = vmatprep.mubr.f32.mxu0 0.0
        %562 = vmatmul.mubr.f32.gmra.mxu0 %v417
        %v563 = vpop.f32.mrf.mxu0
        %v564 = vadd.f32 %v441, %v563
        %v565 = vpop.f32.mrf.mxu0
        %566 = vmatprep.mubr.f32.mxu0 0.0
        %567 = vmatmul.mubr.f32.gmra.mxu0 %v418
        %v568 = vpop.f32.mrf.mxu0
        %v569 = vadd.f32 %v441, %v568
        %v570 = vpop.f32.mrf.mxu0
        %571 = vmatprep.mubr.f32.mxu0 0.0
        %572 = vmatmul.mubr.f32.gmra.mxu0 %v419
        %v573 = vpop.f32.mrf.mxu0
        %v574 = vadd.f32 %v441, %v573
        %v575 = vpop.f32.mrf.mxu0
        %576 = vmatprep.mubr.f32.mxu0 0.0
        %577 = vmatmul.mubr.f32.gmra.mxu0 %v420
        %v578 = vpop.f32.mrf.mxu0
        %v579 = vadd.f32 %v441, %v578
        %v580 = vpop.f32.mrf.mxu0
        %581 = vmatprep.mubr.f32.mxu0 0.0
        %582 = vmatmul.mubr.f32.gmra.mxu0 %v421
        %v583 = vpop.f32.mrf.mxu0
        %v584 = vadd.f32 %v441, %v583
        %v585 = vpop.f32.mrf.mxu0
        %586 = vdwg.mxu0
        %v587 = vtanh.pop %v509
        %v588 = vtanh.pop %v514
        %v589 = vtanh.pop %v519
        %v590 = vtanh.pop %v524
        %v591 = vtanh.pop %v529
        %v592 = vtanh.pop %v534
        %v593 = vtanh.pop %v539
        %v594 = vtanh.pop %v544
        %v595 = vtanh.pop %v549
        %v596 = vtanh.pop %v554
        %v597 = vtanh.pop %v559
        %v598 = vtanh.pop %v564
        %v599 = vtanh.pop %v569
        %v600 = vtanh.pop %v574
        %v601 = vtanh.pop %v579
        %v602 = vtanh.pop %v584
        %v603 = vld [vmem:[#allocation5 + $0x90] sm:$0xff]
        %v604 = vld [vmem:[#allocation5 + $0x98] sm:$0xff]
        %v605 = vld [vmem:[#allocation5 + $0xa0] sm:$0xff]
        %v606 = vld [vmem:[#allocation5 + $0xa8] sm:$0xff]
        %v607 = vld [vmem:[#allocation5 + $0xb0] sm:$0xff]
        %v608 = vld [vmem:[#allocation5 + $0xb8] sm:$0xff]
        %v609 = vld [vmem:[#allocation5 + $0xc0] sm:$0xff]
        %v610 = vld [vmem:[#allocation5 + $0xc8] sm:$0xff]
        %v611 = vld [vmem:[#allocation5 + $0xd0] sm:$0xff]
        %v612 = vld [vmem:[#allocation5 + $0xd8] sm:$0xff]
        %v613 = vld [vmem:[#allocation5 + $0xe0] sm:$0xff]
        %v614 = vld [vmem:[#allocation5 + $0xe8] sm:$0xff]
        %v615 = vld [vmem:[#allocation5 + $0xf0] sm:$0xff]
        %v616 = vld [vmem:[#allocation5 + $0xf8] sm:$0xff]
        %v617 = vld [vmem:[#allocation5 + $0x100] sm:$0xff]
        %v618 = vld [vmem:[#allocation5 + $0x108] sm:$0xff]
        %v619 = vlaneseq
        %v620 = vshrl.u32 %v619, 7
        %v621 = vsub.s32 2, %v620
        %v622 = vrot.slane %v174, %v621
        %623 = vmatprep.subr.mxu0 0.0
        %624 = vmatpush1.msra.mxu0 %v618
        %625 = vmatprep.subr.mxu0 0.0
        %626 = vmatpush1.msra.mxu0 %v617
        %627 = vmatprep.subr.mxu0 0.0
        %628 = vmatpush1.msra.mxu0 %v616
        %629 = vmatprep.subr.mxu0 0.0
        %630 = vmatpush1.msra.mxu0 %v615
        %631 = vmatprep.subr.mxu0 0.0
        %632 = vmatpush1.msra.mxu0 %v614
        %633 = vmatprep.subr.mxu0 0.0
        %634 = vmatpush1.msra.mxu0 %v613
        %635 = vmatprep.subr.mxu0 0.0
        %636 = vmatpush1.msra.mxu0 %v612
        %637 = vmatprep.subr.mxu0 0.0
        %638 = vmatpush1.msra.mxu0 %v611
        %639 = vmatprep.subr.mxu0 0.0
        %640 = vmatpush1.msra.mxu0 %v610
        %641 = vmatprep.subr.mxu0 0.0
        %642 = vmatpush1.msra.mxu0 %v609
        %643 = vmatprep.subr.mxu0 0.0
        %644 = vmatpush1.msra.mxu0 %v608
        %645 = vmatprep.subr.mxu0 0.0
        %646 = vmatpush1.msra.mxu0 %v607
        %647 = vmatprep.subr.mxu0 0.0
        %648 = vmatpush1.msra.mxu0 %v606
        %649 = vmatprep.subr.mxu0 0.0
        %650 = vmatpush1.msra.mxu0 %v605
        %651 = vmatprep.subr.mxu0 0.0
        %652 = vmatpush1.msra.mxu0 %v604
        %653 = vmatprep.subr.mxu0 0.0
        %654 = vmatpush1.msra.mxu0 %v603
        %655 = vmatprep.subr.mxu0 0.0
        %656 = vmatpush2.msra.mxu0 0.0
        %657 = vmatprep.subr.mxu0 0.0
        %658 = vmatpush2.msra.mxu0 0.0
        %659 = vmatprep.subr.mxu0 0.0
        %660 = vmatpush2.msra.mxu0 0.0
        %661 = vmatprep.subr.mxu0 0.0
        %662 = vmatpush2.msra.mxu0 0.0
        %663 = vmatprep.subr.mxu0 0.0
        %664 = vmatpush2.msra.mxu0 0.0
        %665 = vmatprep.subr.mxu0 0.0
        %666 = vmatpush2.msra.mxu0 0.0
        %667 = vmatprep.subr.mxu0 0.0
        %668 = vmatpush2.msra.mxu0 0.0
        %669 = vmatprep.subr.mxu0 0.0
        %670 = vmatpush2.msra.mxu0 0.0
        %671 = vmatprep.subr.mxu0 0.0
        %672 = vmatpush2.msra.mxu0 0.0
        %673 = vmatprep.subr.mxu0 0.0
        %674 = vmatpush2.msra.mxu0 0.0
        %675 = vmatprep.subr.mxu0 0.0
        %676 = vmatpush2.msra.mxu0 0.0
        %677 = vmatprep.subr.mxu0 0.0
        %678 = vmatpush2.msra.mxu0 0.0
        %679 = vmatprep.subr.mxu0 0.0
        %680 = vmatpush2.msra.mxu0 0.0
        %681 = vmatprep.subr.mxu0 0.0
        %682 = vmatpush2.msra.mxu0 0.0
        %683 = vmatprep.subr.mxu0 0.0
        %684 = vmatpush2.msra.mxu0 0.0
        %685 = vmatprep.subr.mxu0 0.0
        %686 = vmatpush2.msra.mxu0 0.0
        %687 = vmatprep.mubr.f32.mxu0 0.0
        %688 = vmatmul.mubr.f32.gmra.mxu0 %v587
        %v689 = vpop.f32.mrf.mxu0
        %v690 = vadd.f32 %v622, %v689
        %v691 = vpop.f32.mrf.mxu0
        %692 = vmatprep.mubr.f32.mxu0 0.0
        %693 = vmatmul.mubr.f32.gmra.mxu0 %v588
        %v694 = vpop.f32.mrf.mxu0
        %v695 = vadd.f32 %v622, %v694
        %v696 = vpop.f32.mrf.mxu0
        %697 = vmatprep.mubr.f32.mxu0 0.0
        %698 = vmatmul.mubr.f32.gmra.mxu0 %v589
        %v699 = vpop.f32.mrf.mxu0
        %v700 = vadd.f32 %v622, %v699
        %v701 = vpop.f32.mrf.mxu0
        %702 = vmatprep.mubr.f32.mxu0 0.0
        %703 = vmatmul.mubr.f32.gmra.mxu0 %v590
        %v704 = vpop.f32.mrf.mxu0
        %v705 = vadd.f32 %v622, %v704
        %v706 = vpop.f32.mrf.mxu0
        %707 = vmatprep.mubr.f32.mxu0 0.0
        %708 = vmatmul.mubr.f32.gmra.mxu0 %v591
        %v709 = vpop.f32.mrf.mxu0
        %v710 = vadd.f32 %v622, %v709
        %v711 = vpop.f32.mrf.mxu0
        %712 = vmatprep.mubr.f32.mxu0 0.0
        %713 = vmatmul.mubr.f32.gmra.mxu0 %v592
        %v714 = vpop.f32.mrf.mxu0
        %v715 = vadd.f32 %v622, %v714
        %v716 = vpop.f32.mrf.mxu0
        %717 = vmatprep.mubr.f32.mxu0 0.0
        %718 = vmatmul.mubr.f32.gmra.mxu0 %v593
        %v719 = vpop.f32.mrf.mxu0
        %v720 = vadd.f32 %v622, %v719
        %v721 = vpop.f32.mrf.mxu0
        %722 = vmatprep.mubr.f32.mxu0 0.0
        %723 = vmatmul.mubr.f32.gmra.mxu0 %v594
        %v724 = vpop.f32.mrf.mxu0
        %v725 = vadd.f32 %v622, %v724
        %v726 = vpop.f32.mrf.mxu0
        %727 = vmatprep.mubr.f32.mxu0 0.0
        %728 = vmatmul.mubr.f32.gmra.mxu0 %v595
        %v729 = vpop.f32.mrf.mxu0
        %v730 = vadd.f32 %v622, %v729
        %v731 = vpop.f32.mrf.mxu0
        %732 = vmatprep.mubr.f32.mxu0 0.0
        %733 = vmatmul.mubr.f32.gmra.mxu0 %v596
        %v734 = vpop.f32.mrf.mxu0
        %v735 = vadd.f32 %v622, %v734
        %v736 = vpop.f32.mrf.mxu0
        %737 = vmatprep.mubr.f32.mxu0 0.0
        %738 = vmatmul.mubr.f32.gmra.mxu0 %v597
        %v739 = vpop.f32.mrf.mxu0
        %v740 = vadd.f32 %v622, %v739
        %v741 = vpop.f32.mrf.mxu0
        %742 = vmatprep.mubr.f32.mxu0 0.0
        %743 = vmatmul.mubr.f32.gmra.mxu0 %v598
        %v744 = vpop.f32.mrf.mxu0
        %v745 = vadd.f32 %v622, %v744
        %v746 = vpop.f32.mrf.mxu0
        %747 = vmatprep.mubr.f32.mxu0 0.0
        %748 = vmatmul.mubr.f32.gmra.mxu0 %v599
        %v749 = vpop.f32.mrf.mxu0
        %v750 = vadd.f32 %v622, %v749
        %v751 = vpop.f32.mrf.mxu0
        %752 = vmatprep.mubr.f32.mxu0 0.0
        %753 = vmatmul.mubr.f32.gmra.mxu0 %v600
        %v754 = vpop.f32.mrf.mxu0
        %v755 = vadd.f32 %v622, %v754
        %v756 = vpop.f32.mrf.mxu0
        %757 = vmatprep.mubr.f32.mxu0 0.0
        %758 = vmatmul.mubr.f32.gmra.mxu0 %v601
        %v759 = vpop.f32.mrf.mxu0
        %v760 = vadd.f32 %v622, %v759
        %v761 = vpop.f32.mrf.mxu0
        %762 = vmatprep.mubr.f32.mxu0 0.0
        %763 = vmatmul.mubr.f32.gmra.mxu0 %v602
        %v764 = vpop.f32.mrf.mxu0
        %v765 = vadd.f32 %v622, %v764
        %v766 = vpop.f32.mrf.mxu0
        %767 = vdwg.mxu0
        %v768 = vtanh.pop %v690
        %v769 = vtanh.pop %v695
        %v770 = vtanh.pop %v700
        %v771 = vtanh.pop %v705
        %v772 = vtanh.pop %v710
        %v773 = vtanh.pop %v715
        %v774 = vtanh.pop %v720
        %v775 = vtanh.pop %v725
        %v776 = vtanh.pop %v730
        %v777 = vtanh.pop %v735
        %v778 = vtanh.pop %v740
        %v779 = vtanh.pop %v745
        %v780 = vtanh.pop %v750
        %v781 = vtanh.pop %v755
        %v782 = vtanh.pop %v760
        %v783 = vtanh.pop %v765
        %v784 = vld [vmem:[#allocation5 + $0x110] sm:$0xff]
        %v785 = vld [vmem:[#allocation5 + $0x118] sm:$0xff]
        %v786 = vld [vmem:[#allocation5 + $0x120] sm:$0xff]
        %v787 = vld [vmem:[#allocation5 + $0x128] sm:$0xff]
        %v788 = vld [vmem:[#allocation5 + $0x130] sm:$0xff]
        %v789 = vld [vmem:[#allocation5 + $0x138] sm:$0xff]
        %v790 = vld [vmem:[#allocation5 + $0x140] sm:$0xff]
        %v791 = vld [vmem:[#allocation5 + $0x148] sm:$0xff]
        %v792 = vld [vmem:[#allocation5 + $0x150] sm:$0xff]
        %v793 = vld [vmem:[#allocation5 + $0x158] sm:$0xff]
        %v794 = vld [vmem:[#allocation5 + $0x160] sm:$0xff]
        %v795 = vld [vmem:[#allocation5 + $0x168] sm:$0xff]
        %v796 = vld [vmem:[#allocation5 + $0x170] sm:$0xff]
        %v797 = vld [vmem:[#allocation5 + $0x178] sm:$0xff]
        %v798 = vld [vmem:[#allocation5 + $0x180] sm:$0xff]
        %v799 = vld [vmem:[#allocation5 + $0x188] sm:$0xff]
        %v800 = vlaneseq
        %v801 = vshrl.u32 %v800, 7
        %v802 = vsub.s32 3, %v801
        %v803 = vrot.slane %v174, %v802
        %804 = vmatprep.subr.mxu0 0.0
        %805 = vmatpush1.msra.mxu0 %v799
        %806 = vmatprep.subr.mxu0 0.0
        %807 = vmatpush1.msra.mxu0 %v798
        %808 = vmatprep.subr.mxu0 0.0
        %809 = vmatpush1.msra.mxu0 %v797
        %810 = vmatprep.subr.mxu0 0.0
        %811 = vmatpush1.msra.mxu0 %v796
        %812 = vmatprep.subr.mxu0 0.0
        %813 = vmatpush1.msra.mxu0 %v795
        %814 = vmatprep.subr.mxu0 0.0
        %815 = vmatpush1.msra.mxu0 %v794
        %816 = vmatprep.subr.mxu0 0.0
        %817 = vmatpush1.msra.mxu0 %v793
        %818 = vmatprep.subr.mxu0 0.0
        %819 = vmatpush1.msra.mxu0 %v792
        %820 = vmatprep.subr.mxu0 0.0
        %821 = vmatpush1.msra.mxu0 %v791
        %822 = vmatprep.subr.mxu0 0.0
        %823 = vmatpush1.msra.mxu0 %v790
        %824 = vmatprep.subr.mxu0 0.0
        %825 = vmatpush1.msra.mxu0 %v789
        %826 = vmatprep.subr.mxu0 0.0
        %827 = vmatpush1.msra.mxu0 %v788
        %828 = vmatprep.subr.mxu0 0.0
        %829 = vmatpush1.msra.mxu0 %v787
        %830 = vmatprep.subr.mxu0 0.0
        %831 = vmatpush1.msra.mxu0 %v786
        %832 = vmatprep.subr.mxu0 0.0
        %833 = vmatpush1.msra.mxu0 %v785
        %834 = vmatprep.subr.mxu0 0.0
        %835 = vmatpush1.msra.mxu0 %v784
        %836 = vmatprep.subr.mxu0 0.0
        %837 = vmatpush2.msra.mxu0 0.0
        %838 = vmatprep.subr.mxu0 0.0
        %839 = vmatpush2.msra.mxu0 0.0
        %840 = vmatprep.subr.mxu0 0.0
        %841 = vmatpush2.msra.mxu0 0.0
        %842 = vmatprep.subr.mxu0 0.0
        %843 = vmatpush2.msra.mxu0 0.0
        %844 = vmatprep.subr.mxu0 0.0
        %845 = vmatpush2.msra.mxu0 0.0
        %846 = vmatprep.subr.mxu0 0.0
        %847 = vmatpush2.msra.mxu0 0.0
        %848 = vmatprep.subr.mxu0 0.0
        %849 = vmatpush2.msra.mxu0 0.0
        %850 = vmatprep.subr.mxu0 0.0
        %851 = vmatpush2.msra.mxu0 0.0
        %852 = vmatprep.subr.mxu0 0.0
        %853 = vmatpush2.msra.mxu0 0.0
        %854 = vmatprep.subr.mxu0 0.0
        %855 = vmatpush2.msra.mxu0 0.0
        %856 = vmatprep.subr.mxu0 0.0
        %857 = vmatpush2.msra.mxu0 0.0
        %858 = vmatprep.subr.mxu0 0.0
        %859 = vmatpush2.msra.mxu0 0.0
        %860 = vmatprep.subr.mxu0 0.0
        %861 = vmatpush2.msra.mxu0 0.0
        %862 = vmatprep.subr.mxu0 0.0
        %863 = vmatpush2.msra.mxu0 0.0
        %864 = vmatprep.subr.mxu0 0.0
        %865 = vmatpush2.msra.mxu0 0.0
        %866 = vmatprep.subr.mxu0 0.0
        %867 = vmatpush2.msra.mxu0 0.0
        %868 = vmatprep.mubr.f32.mxu0 0.0
        %869 = vmatmul.mubr.f32.gmra.mxu0 %v768
        %v870 = vpop.f32.mrf.mxu0
        %v871 = vadd.f32 %v803, %v870
        %v872 = vpop.f32.mrf.mxu0
        %873 = vmatprep.mubr.f32.mxu0 0.0
        %874 = vmatmul.mubr.f32.gmra.mxu0 %v769
        %v875 = vpop.f32.mrf.mxu0
        %v876 = vadd.f32 %v803, %v875
        %v877 = vpop.f32.mrf.mxu0
        %878 = vmatprep.mubr.f32.mxu0 0.0
        %879 = vmatmul.mubr.f32.gmra.mxu0 %v770
        %v880 = vpop.f32.mrf.mxu0
        %v881 = vadd.f32 %v803, %v880
        %v882 = vpop.f32.mrf.mxu0
        %883 = vmatprep.mubr.f32.mxu0 0.0
        %884 = vmatmul.mubr.f32.gmra.mxu0 %v771
        %v885 = vpop.f32.mrf.mxu0
        %v886 = vadd.f32 %v803, %v885
        %v887 = vpop.f32.mrf.mxu0
        %888 = vmatprep.mubr.f32.mxu0 0.0
        %889 = vmatmul.mubr.f32.gmra.mxu0 %v772
        %v890 = vpop.f32.mrf.mxu0
        %v891 = vadd.f32 %v803, %v890
        %v892 = vpop.f32.mrf.mxu0
        %893 = vmatprep.mubr.f32.mxu0 0.0
        %894 = vmatmul.mubr.f32.gmra.mxu0 %v773
        %v895 = vpop.f32.mrf.mxu0
        %v896 = vadd.f32 %v803, %v895
        %v897 = vpop.f32.mrf.mxu0
        %898 = vmatprep.mubr.f32.mxu0 0.0
        %899 = vmatmul.mubr.f32.gmra.mxu0 %v774
        %v900 = vpop.f32.mrf.mxu0
        %v901 = vadd.f32 %v803, %v900
        %v902 = vpop.f32.mrf.mxu0
        %903 = vmatprep.mubr.f32.mxu0 0.0
        %904 = vmatmul.mubr.f32.gmra.mxu0 %v775
        %v905 = vpop.f32.mrf.mxu0
        %v906 = vadd.f32 %v803, %v905
        %v907 = vpop.f32.mrf.mxu0
        %908 = vmatprep.mubr.f32.mxu0 0.0
        %909 = vmatmul.mubr.f32.gmra.mxu0 %v776
        %v910 = vpop.f32.mrf.mxu0
        %v911 = vadd.f32 %v803, %v910
        %v912 = vpop.f32.mrf.mxu0
        %913 = vmatprep.mubr.f32.mxu0 0.0
        %914 = vmatmul.mubr.f32.gmra.mxu0 %v777
        %v915 = vpop.f32.mrf.mxu0
        %v916 = vadd.f32 %v803, %v915
        %v917 = vpop.f32.mrf.mxu0
        %918 = vmatprep.mubr.f32.mxu0 0.0
        %919 = vmatmul.mubr.f32.gmra.mxu0 %v778
        %v920 = vpop.f32.mrf.mxu0
        %v921 = vadd.f32 %v803, %v920
        %v922 = vpop.f32.mrf.mxu0
        %923 = vmatprep.mubr.f32.mxu0 0.0
        %924 = vmatmul.mubr.f32.gmra.mxu0 %v779
        %v925 = vpop.f32.mrf.mxu0
        %v926 = vadd.f32 %v803, %v925
        %v927 = vpop.f32.mrf.mxu0
        %928 = vmatprep.mubr.f32.mxu0 0.0
        %929 = vmatmul.mubr.f32.gmra.mxu0 %v780
        %v930 = vpop.f32.mrf.mxu0
        %v931 = vadd.f32 %v803, %v930
        %v932 = vpop.f32.mrf.mxu0
        %933 = vmatprep.mubr.f32.mxu0 0.0
        %934 = vmatmul.mubr.f32.gmra.mxu0 %v781
        %v935 = vpop.f32.mrf.mxu0
        %v936 = vadd.f32 %v803, %v935
        %v937 = vpop.f32.mrf.mxu0
        %938 = vmatprep.mubr.f32.mxu0 0.0
        %939 = vmatmul.mubr.f32.gmra.mxu0 %v782
        %v940 = vpop.f32.mrf.mxu0
        %v941 = vadd.f32 %v803, %v940
        %v942 = vpop.f32.mrf.mxu0
        %943 = vmatprep.mubr.f32.mxu0 0.0
        %944 = vmatmul.mubr.f32.gmra.mxu0 %v783
        %v945 = vpop.f32.mrf.mxu0
        %v946 = vadd.f32 %v803, %v945
        %v947 = vpop.f32.mrf.mxu0
        %948 = vdwg.mxu0
        %v949 = vtanh.pop %v871
        %v950 = vtanh.pop %v876
        %v951 = vtanh.pop %v881
        %v952 = vtanh.pop %v886
        %v953 = vtanh.pop %v891
        %v954 = vtanh.pop %v896
        %v955 = vtanh.pop %v901
        %v956 = vtanh.pop %v906
        %v957 = vtanh.pop %v911
        %v958 = vtanh.pop %v916
        %v959 = vtanh.pop %v921
        %v960 = vtanh.pop %v926
        %v961 = vtanh.pop %v931
        %v962 = vtanh.pop %v936
        %v963 = vtanh.pop %v941
        %v964 = vtanh.pop %v946
        %v965 = vlaneseq
        %v966 = vand.u32 %v965, 127
        %vm967 = vcmp.ge.s32.totalorder %v966, 64
        %vm968 = vcmp.lt.s32.totalorder %v966, 96
        %vm969 = vmand %vm967, %vm968
        %v970 = vsel %vm969, %v768, 0.0
        %v971 = vsel %vm969, %v769, 0.0
        %v972 = vsel %vm969, %v770, 0.0
        %v973 = vsel %vm969, %v771, 0.0
        %v974 = vsel %vm969, %v772, 0.0
        %v975 = vsel %vm969, %v773, 0.0
        %v976 = vsel %vm969, %v774, 0.0
        %v977 = vsel %vm969, %v775, 0.0
        %v978 = vsel %vm969, %v776, 0.0
        %v979 = vsel %vm969, %v777, 0.0
        %v980 = vsel %vm969, %v778, 0.0
        %v981 = vsel %vm969, %v779, 0.0
        %v982 = vsel %vm969, %v780, 0.0
        %v983 = vsel %vm969, %v781, 0.0
        %v984 = vsel %vm969, %v782, 0.0
        %v985 = vsel %vm969, %v783, 0.0
        %v986 = vadd.f32 %v949, %v970
        %v987 = vadd.f32 %v950, %v971
        %v988 = vadd.f32 %v951, %v972
        %v989 = vadd.f32 %v952, %v973
        %v990 = vadd.f32 %v953, %v974
        %v991 = vadd.f32 %v954, %v975
        %v992 = vadd.f32 %v955, %v976
        %v993 = vadd.f32 %v956, %v977
        %v994 = vadd.f32 %v957, %v978
        %v995 = vadd.f32 %v958, %v979
        %v996 = vadd.f32 %v959, %v980
        %v997 = vadd.f32 %v960, %v981
        %v998 = vadd.f32 %v961, %v982
        %v999 = vadd.f32 %v962, %v983
        %v1000 = vadd.f32 %v963, %v984
        %v1001 = vadd.f32 %v964, %v985
        %v1002 = vld [vmem:[#allocation5 + $0x190] sm:$0xff]
        %v1003 = vld [vmem:[#allocation5 + $0x198] sm:$0xff]
        %v1004 = vld [vmem:[#allocation5 + $0x1a0] sm:$0xff]
        %v1005 = vld [vmem:[#allocation5 + $0x1a8] sm:$0xff]
        %v1006 = vld [vmem:[#allocation5 + $0x1b0] sm:$0xff]
        %v1007 = vld [vmem:[#allocation5 + $0x1b8] sm:$0xff]
        %v1008 = vld [vmem:[#allocation5 + $0x1c0] sm:$0xff]
        %v1009 = vld [vmem:[#allocation5 + $0x1c8] sm:$0xff]
        %v1010 = vld [vmem:[#allocation5 + $0x1d0] sm:$0xff]
        %v1011 = vld [vmem:[#allocation5 + $0x1d8] sm:$0xff]
        %v1012 = vld [vmem:[#allocation5 + $0x1e0] sm:$0xff]
        %v1013 = vld [vmem:[#allocation5 + $0x1e8] sm:$0xff]
        %v1014 = vld [vmem:[#allocation5 + $0x1f0] sm:$0xff]
        %v1015 = vld [vmem:[#allocation5 + $0x1f8] sm:$0xff]
        %v1016 = vld [vmem:[#allocation5 + $0x200] sm:$0xff]
        %v1017 = vld [vmem:[#allocation5 + $0x208] sm:$0xff]
        %v1018 = vlaneseq
        %v1019 = vshrl.u32 %v1018, 7
        %v1020 = vsub.s32 4, %v1019
        %v1021 = vrot.slane %v174, %v1020
        %1022 = vmatprep.subr.mxu0 0.0
        %1023 = vmatpush1.msra.mxu0 %v1017
        %1024 = vmatprep.subr.mxu0 0.0
        %1025 = vmatpush1.msra.mxu0 %v1016
        %1026 = vmatprep.subr.mxu0 0.0
        %1027 = vmatpush1.msra.mxu0 %v1015
        %1028 = vmatprep.subr.mxu0 0.0
        %1029 = vmatpush1.msra.mxu0 %v1014
        %1030 = vmatprep.subr.mxu0 0.0
        %1031 = vmatpush1.msra.mxu0 %v1013
        %1032 = vmatprep.subr.mxu0 0.0
        %1033 = vmatpush1.msra.mxu0 %v1012
        %1034 = vmatprep.subr.mxu0 0.0
        %1035 = vmatpush1.msra.mxu0 %v1011
        %1036 = vmatprep.subr.mxu0 0.0
        %1037 = vmatpush1.msra.mxu0 %v1010
        %1038 = vmatprep.subr.mxu0 0.0
        %1039 = vmatpush1.msra.mxu0 %v1009
        %1040 = vmatprep.subr.mxu0 0.0
        %1041 = vmatpush1.msra.mxu0 %v1008
        %1042 = vmatprep.subr.mxu0 0.0
        %1043 = vmatpush1.msra.mxu0 %v1007
        %1044 = vmatprep.subr.mxu0 0.0
        %1045 = vmatpush1.msra.mxu0 %v1006
        %1046 = vmatprep.subr.mxu0 0.0
        %1047 = vmatpush1.msra.mxu0 %v1005
        %1048 = vmatprep.subr.mxu0 0.0
        %1049 = vmatpush1.msra.mxu0 %v1004
        %1050 = vmatprep.subr.mxu0 0.0
        %1051 = vmatpush1.msra.mxu0 %v1003
        %1052 = vmatprep.subr.mxu0 0.0
        %1053 = vmatpush1.msra.mxu0 %v1002
        %1054 = vmatprep.subr.mxu0 0.0
        %1055 = vmatpush2.msra.mxu0 0.0
        %1056 = vmatprep.subr.mxu0 0.0
        %1057 = vmatpush2.msra.mxu0 0.0
        %1058 = vmatprep.subr.mxu0 0.0
        %1059 = vmatpush2.msra.mxu0 0.0
        %1060 = vmatprep.subr.mxu0 0.0
        %1061 = vmatpush2.msra.mxu0 0.0
        %1062 = vmatprep.subr.mxu0 0.0
        %1063 = vmatpush2.msra.mxu0 0.0
        %1064 = vmatprep.subr.mxu0 0.0
        %1065 = vmatpush2.msra.mxu0 0.0
        %1066 = vmatprep.subr.mxu0 0.0
        %1067 = vmatpush2.msra.mxu0 0.0
        %1068 = vmatprep.subr.mxu0 0.0
        %1069 = vmatpush2.msra.mxu0 0.0
        %1070 = vmatprep.subr.mxu0 0.0
        %1071 = vmatpush2.msra.mxu0 0.0
        %1072 = vmatprep.subr.mxu0 0.0
        %1073 = vmatpush2.msra.mxu0 0.0
        %1074 = vmatprep.subr.mxu0 0.0
        %1075 = vmatpush2.msra.mxu0 0.0
        %1076 = vmatprep.subr.mxu0 0.0
        %1077 = vmatpush2.msra.mxu0 0.0
        %1078 = vmatprep.subr.mxu0 0.0
        %1079 = vmatpush2.msra.mxu0 0.0
        %1080 = vmatprep.subr.mxu0 0.0
        %1081 = vmatpush2.msra.mxu0 0.0
        %1082 = vmatprep.subr.mxu0 0.0
        %1083 = vmatpush2.msra.mxu0 0.0
        %1084 = vmatprep.subr.mxu0 0.0
        %1085 = vmatpush2.msra.mxu0 0.0
        %1086 = vmatprep.mubr.f32.mxu0 0.0
        %1087 = vmatmul.mubr.f32.gmra.mxu0 %v986
        %v1088 = vpop.f32.mrf.mxu0
        %v1089 = vadd.f32 %v1021, %v1088
        %v1090 = vpop.f32.mrf.mxu0
        %1091 = vmatprep.mubr.f32.mxu0 0.0
        %1092 = vmatmul.mubr.f32.gmra.mxu0 %v987
        %v1093 = vpop.f32.mrf.mxu0
        %v1094 = vadd.f32 %v1021, %v1093
        %v1095 = vpop.f32.mrf.mxu0
        %1096 = vmatprep.mubr.f32.mxu0 0.0
        %1097 = vmatmul.mubr.f32.gmra.mxu0 %v988
        %v1098 = vpop.f32.mrf.mxu0
        %v1099 = vadd.f32 %v1021, %v1098
        %v1100 = vpop.f32.mrf.mxu0
        %1101 = vmatprep.mubr.f32.mxu0 0.0
        %1102 = vmatmul.mubr.f32.gmra.mxu0 %v989
        %v1103 = vpop.f32.mrf.mxu0
        %v1104 = vadd.f32 %v1021, %v1103
        %v1105 = vpop.f32.mrf.mxu0
        %1106 = vmatprep.mubr.f32.mxu0 0.0
        %1107 = vmatmul.mubr.f32.gmra.mxu0 %v990
        %v1108 = vpop.f32.mrf.mxu0
        %v1109 = vadd.f32 %v1021, %v1108
        %v1110 = vpop.f32.mrf.mxu0
        %1111 = vmatprep.mubr.f32.mxu0 0.0
        %1112 = vmatmul.mubr.f32.gmra.mxu0 %v991
        %v1113 = vpop.f32.mrf.mxu0
        %v1114 = vadd.f32 %v1021, %v1113
        %v1115 = vpop.f32.mrf.mxu0
        %1116 = vmatprep.mubr.f32.mxu0 0.0
        %1117 = vmatmul.mubr.f32.gmra.mxu0 %v992
        %v1118 = vpop.f32.mrf.mxu0
        %v1119 = vadd.f32 %v1021, %v1118
        %v1120 = vpop.f32.mrf.mxu0
        %1121 = vmatprep.mubr.f32.mxu0 0.0
        %1122 = vmatmul.mubr.f32.gmra.mxu0 %v993
        %v1123 = vpop.f32.mrf.mxu0
        %v1124 = vadd.f32 %v1021, %v1123
        %v1125 = vpop.f32.mrf.mxu0
        %1126 = vmatprep.mubr.f32.mxu0 0.0
        %1127 = vmatmul.mubr.f32.gmra.mxu0 %v994
        %v1128 = vpop.f32.mrf.mxu0
        %v1129 = vadd.f32 %v1021, %v1128
        %v1130 = vpop.f32.mrf.mxu0
        %1131 = vmatprep.mubr.f32.mxu0 0.0
        %1132 = vmatmul.mubr.f32.gmra.mxu0 %v995
        %v1133 = vpop.f32.mrf.mxu0
        %v1134 = vadd.f32 %v1021, %v1133
        %v1135 = vpop.f32.mrf.mxu0
        %1136 = vmatprep.mubr.f32.mxu0 0.0
        %1137 = vmatmul.mubr.f32.gmra.mxu0 %v996
        %v1138 = vpop.f32.mrf.mxu0
        %v1139 = vadd.f32 %v1021, %v1138
        %v1140 = vpop.f32.mrf.mxu0
        %1141 = vmatprep.mubr.f32.mxu0 0.0
        %1142 = vmatmul.mubr.f32.gmra.mxu0 %v997
        %v1143 = vpop.f32.mrf.mxu0
        %v1144 = vadd.f32 %v1021, %v1143
        %v1145 = vpop.f32.mrf.mxu0
        %1146 = vmatprep.mubr.f32.mxu0 0.0
        %1147 = vmatmul.mubr.f32.gmra.mxu0 %v998
        %v1148 = vpop.f32.mrf.mxu0
        %v1149 = vadd.f32 %v1021, %v1148
        %v1150 = vpop.f32.mrf.mxu0
        %1151 = vmatprep.mubr.f32.mxu0 0.0
        %1152 = vmatmul.mubr.f32.gmra.mxu0 %v999
        %v1153 = vpop.f32.mrf.mxu0
        %v1154 = vadd.f32 %v1021, %v1153
        %v1155 = vpop.f32.mrf.mxu0
        %1156 = vmatprep.mubr.f32.mxu0 0.0
        %1157 = vmatmul.mubr.f32.gmra.mxu0 %v1000
        %v1158 = vpop.f32.mrf.mxu0
        %v1159 = vadd.f32 %v1021, %v1158
        %v1160 = vpop.f32.mrf.mxu0
        %1161 = vmatprep.mubr.f32.mxu0 0.0
        %1162 = vmatmul.mubr.f32.gmra.mxu0 %v1001
        %v1163 = vpop.f32.mrf.mxu0
        %v1164 = vadd.f32 %v1021, %v1163
        %v1165 = vpop.f32.mrf.mxu0
        %1166 = vdwg.mxu0
        %v1167 = vtanh.pop %v1089
        %v1168 = vtanh.pop %v1094
        %v1169 = vtanh.pop %v1099
        %v1170 = vtanh.pop %v1104
        %v1171 = vtanh.pop %v1109
        %v1172 = vtanh.pop %v1114
        %v1173 = vtanh.pop %v1119
        %v1174 = vtanh.pop %v1124
        %v1175 = vtanh.pop %v1129
        %v1176 = vtanh.pop %v1134
        %v1177 = vtanh.pop %v1139
        %v1178 = vtanh.pop %v1144
        %v1179 = vtanh.pop %v1149
        %v1180 = vtanh.pop %v1154
        %v1181 = vtanh.pop %v1159
        %v1182 = vtanh.pop %v1164
        %1184 = vset.pattern.permute.xlu0 0
        %1185 = vperm.xlu0 %1184, %v174
        %v1186 = vpop.permute.xlu0 %1185
        %v1187 = vrot.slane %v174, 5
        %v1189 = vrot.slane %v1186, 6
        %1191 = vmatprep.subr.mxu0 0.0
        %1192 = vmatpush1.xpose.msra.mxu0 %v1182
        %1193 = vmatprep.subr.mxu0 0.0
        %1194 = vmatpush1.xpose.msra.mxu0 %v1181
        %1195 = vmatprep.subr.mxu0 0.0
        %1196 = vmatpush1.xpose.msra.mxu0 %v1180
        %1197 = vmatprep.subr.mxu0 0.0
        %1198 = vmatpush1.xpose.msra.mxu0 %v1179
        %1199 = vmatprep.subr.mxu0 0.0
        %1200 = vmatpush1.xpose.msra.mxu0 %v1178
        %1201 = vmatprep.subr.mxu0 0.0
        %1202 = vmatpush1.xpose.msra.mxu0 %v1177
        %1203 = vmatprep.subr.mxu0 0.0
        %1204 = vmatpush1.xpose.msra.mxu0 %v1176
        %1205 = vmatprep.subr.mxu0 0.0
        %1206 = vmatpush1.xpose.msra.mxu0 %v1175
        %1207 = vmatprep.subr.mxu0 0.0
        %1208 = vmatpush1.xpose.msra.mxu0 %v1174
        %1209 = vmatprep.subr.mxu0 0.0
        %1210 = vmatpush1.xpose.msra.mxu0 %v1173
        %1211 = vmatprep.subr.mxu0 0.0
        %1212 = vmatpush1.xpose.msra.mxu0 %v1172
        %1213 = vmatprep.subr.mxu0 0.0
        %1214 = vmatpush1.xpose.msra.mxu0 %v1171
        %1215 = vmatprep.subr.mxu0 0.0
        %1216 = vmatpush1.xpose.msra.mxu0 %v1170
        %1217 = vmatprep.subr.mxu0 0.0
        %1218 = vmatpush1.xpose.msra.mxu0 %v1169
        %1219 = vmatprep.subr.mxu0 0.0
        %1220 = vmatpush1.xpose.msra.mxu0 %v1168
        %1221 = vmatprep.subr.mxu0 0.0
        %1222 = vmatpush1.xpose.msra.mxu0 %v1167
        %1223 = vmatprep.subr.mxu0 0.0
        %1224 = vmatpush2.xpose.msra.mxu0 0.0
        %1225 = vmatprep.subr.mxu0 0.0
        %1226 = vmatpush2.xpose.msra.mxu0 0.0
        %1227 = vmatprep.subr.mxu0 0.0
        %1228 = vmatpush2.xpose.msra.mxu0 0.0
        %1229 = vmatprep.subr.mxu0 0.0
        %1230 = vmatpush2.xpose.msra.mxu0 0.0
        %1231 = vmatprep.subr.mxu0 0.0
        %1232 = vmatpush2.xpose.msra.mxu0 0.0
        %1233 = vmatprep.subr.mxu0 0.0
        %1234 = vmatpush2.xpose.msra.mxu0 0.0
        %1235 = vmatprep.subr.mxu0 0.0
        %1236 = vmatpush2.xpose.msra.mxu0 0.0
        %1237 = vmatprep.subr.mxu0 0.0
        %1238 = vmatpush2.xpose.msra.mxu0 0.0
        %1239 = vmatprep.subr.mxu0 0.0
        %1240 = vmatpush2.xpose.msra.mxu0 0.0
        %1241 = vmatprep.subr.mxu0 0.0
        %1242 = vmatpush2.xpose.msra.mxu0 0.0
        %1243 = vmatprep.subr.mxu0 0.0
        %1244 = vmatpush2.xpose.msra.mxu0 0.0
        %1245 = vmatprep.subr.mxu0 0.0
        %1246 = vmatpush2.xpose.msra.mxu0 0.0
        %1247 = vmatprep.subr.mxu0 0.0
        %1248 = vmatpush2.xpose.msra.mxu0 0.0
        %1249 = vmatprep.subr.mxu0 0.0
        %1250 = vmatpush2.xpose.msra.mxu0 0.0
        %1251 = vmatprep.subr.mxu0 0.0
        %1252 = vmatpush2.xpose.msra.mxu0 0.0
        %1253 = vmatprep.subr.mxu0 0.0
        %1254 = vmatpush2.xpose.msra.mxu0 0.0
        %1255 = vmatprep.mubr.f32.mxu0 0.0
        %1256 = vmatmul.mubr.f32.gmra.mxu0 %v1187
        %v1257 = vpop.f32.mrf.mxu0
        %v1258 = vadd.f32 %v1189, %v1257
        %v1259 = vpop.f32.mrf.mxu0
        %1260 = vdwg.mxu0
        %1261 = vst [vmem:[%s172] sm:$0x1] %v1258
        %s1262 = sand.u32 %s75, 1
        %s1263 = scalar_lea.sflag [#allocation4], %s1262
        %s1264 = sand.u32 %s75, 1
        %s1265 = scalar_lea.vmem [#allocation7], %s1264
        // Predicated region
        $region37: #{tpu_custom_call.1} parent=27 // pred_check
          %p1266 = pneg %p85
        $region38: #{tpu_custom_call.1} parent=27 // pred_check_branch
          %1268 = sbr.rel (%p1266) target = $region40
        $region39: #{tpu_custom_call.1} parent=27 // pred_region
          %s1270 = ssub.s32 16, 16
          %1271 = vsyncadd %s1263, %s1270
          %s1272 = smul.addr %s20, 16
          %s1273 = scalar_lea.hbm %s2, %s1272
          %s1275 = sshll.u32 %s1265, 4
          %s1276 = int_to_ptr.vmem [resolvable:$true] %s1275
          %1278 = dma.vmem_to_hbm [thread:$0]  %s1276, 16, %s1273, %s1263
        $region40: #{tpu_custom_call.1} parent=27 // pred_fallthru
          _
      $region28: #{tpu_custom_call.1} parent=5 // pred_fallthru
        _
      %p1279 = scmp.le.s32.totalorder 2, %s15
      // Predicated region
      $region41: #{tpu_custom_call.1} parent=5 // pred_check
        %p1280 = pneg %p1279
      $region42: #{tpu_custom_call.1} parent=5 // pred_check_branch
        %1282 = sbr.rel (%p1280) target = $region44
      $region43: #{tpu_custom_call.1} parent=5 // pred_region
        %s1283 = ssub.s32 %s15, 2
        // Predicated region
        $region45: #{tpu_custom_call.1} parent=43 // pred_check
          %p1284 = pneg %p91
        $region46: #{tpu_custom_call.1} parent=43 // pred_check_branch
          %1286 = sbr.rel (%p1284) target = $region48
        $region47: #{tpu_custom_call.1} parent=43 // pred_region
          %s1287 = sand.u32 %s76, 1
          %s1288 = scalar_lea.sflag [#allocation4], %s1287
          %s1289 = sand.u32 %s76, 1
          %s1290 = scalar_lea.vmem [#allocation7], %s1289
          %1291 = dma.done %s1288, 16
        $region48: #{tpu_custom_call.1} parent=43 // pred_fallthru
          _
      $region44: #{tpu_custom_call.1} parent=5 // pred_fallthru
        _
    $region6: #{tpu_custom_call.1} parent=1 // loop_footer
      %s19 = sadd.s32 1, %s15
    $region7: #{tpu_custom_call.1} parent=1 // loop_footer_branch
      %14 = sbr.rel target = $region3
    $region8: #{tpu_custom_call.1} parent=1 // loop_exit
      _
    %1292 = vsyncpa [#allocation3], 1
    %s1293 = scalar_lea.sflag [#allocation3], 1
    %1294 = vsyncpa %s1293, 1
    %1295 = vsyncpa [#allocation6], 1
    %1296 = vsyncpa [#allocation4], 1
    %s1297 = scalar_lea.sflag [#allocation4], 1
    %1298 = vsyncpa %s1297, 1

</llo_original>
